<compile_context>
chip_gen: v7x
topology: tpu7x:2x2x1
jax: 0.10.0
libtpu: 0.0.40
codegen_flags: <defaults>
</compile_context>

<pallas_src>
import jax
import jax.numpy as jnp
from jax.experimental import pallas as pl
from jax.experimental.pallas import tpu as pltpu

EPS = 1e-5
CPAD = 8  # channels padded to one full sublane group


def _pack_weight_oihw(w, cpad):
    """(outC, inC, 3, 3) OIHW -> (cpad, 9*cpad) so the conv becomes one matmul."""
    cout, cin, kh, kw = w.shape
    wt = jnp.transpose(w, (0, 2, 3, 1)).reshape(cout, kh * kw, cin)  # [co, tap, ci]
    wt = jnp.pad(wt, ((0, cpad - cout), (0, 0), (0, cpad - cin)))
    return wt.reshape(cpad, kh * kw * cpad).astype(jnp.float32)


def _pack_param(v, cpad):
    c = v.shape[0]
    return jnp.pad(v.astype(jnp.float32).reshape(c, 1), ((0, cpad - c), (0, 0)))


def make_resblock_kernel(height, width):
    hw = height * width

    def kernel(x_ref, w1_ref, w2_ref, p_ref, o_ref):
        nhw = x_ref.shape[1]
        x = x_ref[...]                        # (CPAD, NHW) f32, lane-dense

        # Per-lane in-image coordinates derived in-kernel (no HBM mask inputs).
        # Only rem-by-constant is needed: h>0 <=> (flat % HW) >= W, etc.
        flat = jax.lax.broadcasted_iota(jnp.int32, (CPAD, nhw), 1)
        rhw = flat % hw                       # position inside one image
        rw = flat % width                     # column inside one row
        h_lo = rhw >= width                   # tap dy = -1 stays inside the image
        h_hi = rhw < (height - 1) * width     # tap dy = +1
        w_lo = rw != 0                        # tap dx = -1
        w_hi = rw != width - 1                # tap dx = +1

        # Combined boundary mask per tap, built once and shared by both convs.
        taps = []
        for dy in (-1, 0, 1):
            for dx in (-1, 0, 1):
                m = None
                for cond, use in ((h_lo, dy == -1), (h_hi, dy == 1),
                                  (w_lo, dx == -1), (w_hi, dx == 1)):
                    if use:
                        m = cond if m is None else jnp.logical_and(m, cond)
                taps.append((dy * width + dx, m))

        def conv3x3(a, wmat):
            # 9 shifted/masked taps (XLU rolls + VPU selects), stacked along
            # sublanes, contracted once on the MXU: (CPAD,9*CPAD) x (9*CPAD,NHW).
            chunks = []
            for off, m in taps:
                s = a if off == 0 else pltpu.roll(a, shift=(-off) % nhw, axis=1)
                if m is not None:
                    s = jnp.where(m, s, 0.0)
                chunks.append(s)
            stacked = jnp.concatenate(chunks, axis=0)          # (9*CPAD, NHW)
            return jnp.dot(wmat, stacked, preferred_element_type=jnp.float32)

        def bn_relu(t, g, b):
            # single-pass training-mode BatchNorm folded into scale/shift + ReLU
            inv_n = 1.0 / nhw                                  # N*H*W samples/channel
            s1 = jnp.sum(t, axis=1, keepdims=True)
            s2 = jnp.sum(t * t, axis=1, keepdims=True)
            mean = s1 * inv_n
            var = jnp.maximum(s2 * inv_n - mean * mean, 0.0)   # biased variance
            scale = g * jax.lax.rsqrt(var + EPS)
            shift = b - mean * scale
            return jnp.maximum(t * scale + shift, 0.0)

        p = p_ref[...]                        # (CPAD, 4): [g1, b1, g2, b2]
        h1 = bn_relu(conv3x3(x, w1_ref[...]), p[:, 0:1], p[:, 1:2])
        h2 = bn_relu(conv3x3(h1, w2_ref[...]), p[:, 2:3], p[:, 3:4])
        o_ref[...] = (h2 + x).astype(o_ref.dtype)              # identity shortcut

    return kernel


def resblock_forward(x_nchw, w1, g1, b1, w2, g2, b2):
    """x: (N, C, H, W); w*: (C, C, 3, 3) OIHW (PyTorch); g*/b*: (C,)."""
    N, C, H, W = x_nchw.shape
    assert w1.shape == (C, C, 3, 3) and w2.shape == (C, C, 3, 3), \
        "ResBlock.forward requires inC == outC"
    assert C <= CPAD
    NHW = N * H * W
    assert NHW % 128 == 0, "flattened N*H*W must be a multiple of 128 (lane-dense)"

    # ---- pure layout plumbing (outside the kernel) ----
    # activations: (N,C,H,W) -> (CPAD, N*H*W): channels on sublanes, space on lanes
    xp = jnp.transpose(x_nchw.astype(jnp.float32), (1, 0, 2, 3)).reshape(C, NHW)
    xp = jnp.pad(xp, ((0, CPAD - C), (0, 0)))
    # all four BN parameter vectors packed into one (CPAD, 4) slab -> one DMA
    params = jnp.concatenate(
        [_pack_param(g1, CPAD), _pack_param(b1, CPAD),
         _pack_param(g2, CPAD), _pack_param(b2, CPAD)], axis=1)

    out = pl.pallas_call(
        make_resblock_kernel(H, W),
        out_shape=jax.ShapeDtypeStruct((CPAD, NHW), jnp.float32),
        in_specs=[pl.BlockSpec(memory_space=pltpu.MemorySpace.VMEM)] * 4,
        out_specs=pl.BlockSpec(memory_space=pltpu.MemorySpace.VMEM),
    )(xp, _pack_weight_oihw(w1, CPAD), _pack_weight_oihw(w2, CPAD), params)

    # (CPAD, N*H*W) -> (N, C, H, W)
    return out[:C].reshape(C, N, H, W).transpose(1, 0, 2, 3)


def resblock_reference(x, w1, g1, b1, w2, g2, b2):
    """Pure-JAX NCHW reference mirroring the PyTorch forward (training-mode BN)."""
    def conv(h, w):
        return jax.lax.conv_general_dilated(
            h, w, window_strides=(1, 1), padding=((1, 1), (1, 1)),
            dimension_numbers=("NCHW", "OIHW", "NCHW"))

    def bn_relu(h, g, b):
        mean = h.mean(axis=(0, 2, 3), keepdims=True)
        var = ((h - mean) ** 2).mean(axis=(0, 2, 3), keepdims=True)
        y = (h - mean) / jnp.sqrt(var + EPS)
        y = y * g.reshape(1, -1, 1, 1) + b.reshape(1, -1, 1, 1)
        return jnp.maximum(y, 0.0)

    h1 = bn_relu(conv(x, w1), g1, b1)
    h2 = bn_relu(conv(h1, w2), g2, b2)
    return h2 + x


if __name__ == "__main__":
    # Shapes consistent with the module: NCHW (2, 4, 16, 16), inC == outC == 4.
    N, C, H, W = 2, 4, 16, 16

    key = jax.random.PRNGKey(0)
    kx, kw1, kw2, kg1, kb1, kg2, kb2 = jax.random.split(key, 7)

    x = jax.random.normal(kx, (N, C, H, W), dtype=jnp.float32)
    w1 = 0.1 * jax.random.normal(kw1, (C, C, 3, 3), dtype=jnp.float32)  # OIHW
    w2 = 0.1 * jax.random.normal(kw2, (C, C, 3, 3), dtype=jnp.float32)
    g1 = 1.0 + 0.1 * jax.random.normal(kg1, (C,), dtype=jnp.float32)
    b1 = 0.1 * jax.random.normal(kb1, (C,), dtype=jnp.float32)
    g2 = 1.0 + 0.1 * jax.random.normal(kg2, (C,), dtype=jnp.float32)
    b2 = 0.1 * jax.random.normal(kb2, (C,), dtype=jnp.float32)

    out = jax.block_until_ready(resblock_forward(x, w1, g1, b1, w2, g2, b2))

    ref = resblock_reference(x, w1, g1, b1, w2, g2, b2)
    assert out.shape == (N, C, H, W)
    err = jnp.max(jnp.abs(out - ref))
    assert jnp.allclose(out, ref, atol=1e-4, rtol=1e-4), f"max abs err {err}"

    print("KERNEL_OK")
</pallas_src>

<mosaic_0001>
module attributes {stable_mosaic.version = 11 : i64} {
  func.func @kernel(%arg0: memref<8x512xf32, #tpu.memory_space<vmem>>, %arg1: memref<8x72xf32, #tpu.memory_space<vmem>>, %arg2: memref<8x72xf32, #tpu.memory_space<vmem>>, %arg3: memref<8x4xf32, #tpu.memory_space<vmem>>, %arg4: memref<8x512xf32, #tpu.memory_space<vmem>>) attributes {dimension_semantics = [], scalar_prefetch = 0 : i64, scratch_operands = 0 : i64, tpu.core_type = #tpu.core_type<tc>} {
    %c0 = arith.constant 0 : index
    %c0_0 = arith.constant 0 : index
    %0 = vector.load %arg0[%c0, %c0_0] : memref<8x512xf32, #tpu.memory_space<vmem>>, vector<8x512xf32>
    %1 = tpu.iota {dimensions = array<i32: 1>} : vector<8x512xi32>
    %c256_i32 = arith.constant 256 : i32
    %c0_i32 = arith.constant 0 : i32
    %2 = arith.cmpi eq, %c256_i32, %c0_i32 : i32
    %c1_i32 = arith.constant 1 : i32
    %3 = arith.select %2, %c1_i32, %c256_i32 : i32
    %4 = vector.broadcast %3 : i32 to vector<8x512xi32>
    %5 = arith.remsi %1, %4 : vector<8x512xi32>
    %c0_i32_1 = arith.constant 0 : i32
    %6 = vector.broadcast %c0_i32_1 : i32 to vector<8x512xi32>
    %7 = arith.cmpi ne, %5, %6 : vector<8x512xi32>
    %c0_i32_2 = arith.constant 0 : i32
    %8 = vector.broadcast %c0_i32_2 : i32 to vector<8x512xi32>
    %9 = arith.cmpi slt, %5, %8 : vector<8x512xi32>
    %c0_i32_3 = arith.constant 0 : i32
    %10 = arith.cmpi slt, %3, %c0_i32_3 : i32
    %11 = vector.broadcast %10 : i1 to vector<8x512xi1>
    %12 = vector.broadcast %11 : vector<8x512xi1> to vector<8x512xi1>
    %13 = arith.xori %9, %12 : vector<8x512xi1>
    %14 = arith.andi %13, %7 : vector<8x512xi1>
    %15 = vector.broadcast %3 : i32 to vector<8x512xi32>
    %16 = arith.addi %5, %15 : vector<8x512xi32>
    %17 = arith.select %14, %16, %5 : vector<8x512xi1>, vector<8x512xi32>
    %c16_i32 = arith.constant 16 : i32
    %c0_i32_4 = arith.constant 0 : i32
    %18 = arith.cmpi eq, %c16_i32, %c0_i32_4 : i32
    %c1_i32_5 = arith.constant 1 : i32
    %19 = arith.select %18, %c1_i32_5, %c16_i32 : i32
    %20 = vector.broadcast %19 : i32 to vector<8x512xi32>
    %21 = arith.remsi %1, %20 : vector<8x512xi32>
    %c0_i32_6 = arith.constant 0 : i32
    %22 = vector.broadcast %c0_i32_6 : i32 to vector<8x512xi32>
    %23 = arith.cmpi ne, %21, %22 : vector<8x512xi32>
    %c0_i32_7 = arith.constant 0 : i32
    %24 = vector.broadcast %c0_i32_7 : i32 to vector<8x512xi32>
    %25 = arith.cmpi slt, %21, %24 : vector<8x512xi32>
    %c0_i32_8 = arith.constant 0 : i32
    %26 = arith.cmpi slt, %19, %c0_i32_8 : i32
    %27 = vector.broadcast %26 : i1 to vector<8x512xi1>
    %28 = vector.broadcast %27 : vector<8x512xi1> to vector<8x512xi1>
    %29 = arith.xori %25, %28 : vector<8x512xi1>
    %30 = arith.andi %29, %23 : vector<8x512xi1>
    %31 = vector.broadcast %19 : i32 to vector<8x512xi32>
    %32 = arith.addi %21, %31 : vector<8x512xi32>
    %33 = arith.select %30, %32, %21 : vector<8x512xi1>, vector<8x512xi32>
    %c16_i32_9 = arith.constant 16 : i32
    %34 = vector.broadcast %c16_i32_9 : i32 to vector<8x512xi32>
    %35 = arith.cmpi sge, %17, %34 : vector<8x512xi32>
    %c240_i32 = arith.constant 240 : i32
    %36 = vector.broadcast %c240_i32 : i32 to vector<8x512xi32>
    %37 = arith.cmpi slt, %17, %36 : vector<8x512xi32>
    %c0_i32_10 = arith.constant 0 : i32
    %38 = vector.broadcast %c0_i32_10 : i32 to vector<8x512xi32>
    %39 = arith.cmpi ne, %33, %38 : vector<8x512xi32>
    %c15_i32 = arith.constant 15 : i32
    %40 = vector.broadcast %c15_i32 : i32 to vector<8x512xi32>
    %41 = arith.cmpi ne, %33, %40 : vector<8x512xi32>
    %42 = arith.andi %35, %39 : vector<8x512xi1>
    %43 = arith.andi %35, %41 : vector<8x512xi1>
    %44 = arith.andi %37, %39 : vector<8x512xi1>
    %45 = arith.andi %37, %41 : vector<8x512xi1>
    %c0_11 = arith.constant 0 : index
    %c0_12 = arith.constant 0 : index
    %46 = vector.load %arg3[%c0_11, %c0_12] : memref<8x4xf32, #tpu.memory_space<vmem>>, vector<8x4xf32>
    %c0_13 = arith.constant 0 : index
    %c0_14 = arith.constant 0 : index
    %47 = vector.load %arg1[%c0_13, %c0_14] : memref<8x72xf32, #tpu.memory_space<vmem>>, vector<8x72xf32>
    %c17_i32 = arith.constant 17 : i32
    %48 = tpu.dynamic_rotate %0 by %c17_i32 dim 1 : vector<8x512xf32>, i32 -> vector<8x512xf32>
    %cst = arith.constant 0.000000e+00 : f32
    %49 = vector.broadcast %cst : f32 to vector<8x512xf32>
    %50 = arith.select %42, %48, %49 : vector<8x512xi1>, vector<8x512xf32>
    %c16_i32_15 = arith.constant 16 : i32
    %51 = tpu.dynamic_rotate %0 by %c16_i32_15 dim 1 : vector<8x512xf32>, i32 -> vector<8x512xf32>
    %cst_16 = arith.constant 0.000000e+00 : f32
    %52 = vector.broadcast %cst_16 : f32 to vector<8x512xf32>
    %53 = arith.select %35, %51, %52 : vector<8x512xi1>, vector<8x512xf32>
    %c15_i32_17 = arith.constant 15 : i32
    %54 = tpu.dynamic_rotate %0 by %c15_i32_17 dim 1 : vector<8x512xf32>, i32 -> vector<8x512xf32>
    %cst_18 = arith.constant 0.000000e+00 : f32
    %55 = vector.broadcast %cst_18 : f32 to vector<8x512xf32>
    %56 = arith.select %43, %54, %55 : vector<8x512xi1>, vector<8x512xf32>
    %c1_i32_19 = arith.constant 1 : i32
    %57 = tpu.dynamic_rotate %0 by %c1_i32_19 dim 1 : vector<8x512xf32>, i32 -> vector<8x512xf32>
    %cst_20 = arith.constant 0.000000e+00 : f32
    %58 = vector.broadcast %cst_20 : f32 to vector<8x512xf32>
    %59 = arith.select %39, %57, %58 : vector<8x512xi1>, vector<8x512xf32>
    %c511_i32 = arith.constant 511 : i32
    %60 = tpu.dynamic_rotate %0 by %c511_i32 dim 1 : vector<8x512xf32>, i32 -> vector<8x512xf32>
    %cst_21 = arith.constant 0.000000e+00 : f32
    %61 = vector.broadcast %cst_21 : f32 to vector<8x512xf32>
    %62 = arith.select %41, %60, %61 : vector<8x512xi1>, vector<8x512xf32>
    %c497_i32 = arith.constant 497 : i32
    %63 = tpu.dynamic_rotate %0 by %c497_i32 dim 1 : vector<8x512xf32>, i32 -> vector<8x512xf32>
    %cst_22 = arith.constant 0.000000e+00 : f32
    %64 = vector.broadcast %cst_22 : f32 to vector<8x512xf32>
    %65 = arith.select %44, %63, %64 : vector<8x512xi1>, vector<8x512xf32>
    %c496_i32 = arith.constant 496 : i32
    %66 = tpu.dynamic_rotate %0 by %c496_i32 dim 1 : vector<8x512xf32>, i32 -> vector<8x512xf32>
    %cst_23 = arith.constant 0.000000e+00 : f32
    %67 = vector.broadcast %cst_23 : f32 to vector<8x512xf32>
    %68 = arith.select %37, %66, %67 : vector<8x512xi1>, vector<8x512xf32>
    %c495_i32 = arith.constant 495 : i32
    %69 = tpu.dynamic_rotate %0 by %c495_i32 dim 1 : vector<8x512xf32>, i32 -> vector<8x512xf32>
    %cst_24 = arith.constant 0.000000e+00 : f32
    %70 = vector.broadcast %cst_24 : f32 to vector<8x512xf32>
    %71 = arith.select %45, %69, %70 : vector<8x512xi1>, vector<8x512xf32>
    %72 = tpu.concatenate %50, %53, %56, %59, %0, %62, %65, %68, %71 in 0 : vector<8x512xf32>, vector<8x512xf32>, vector<8x512xf32>, vector<8x512xf32>, vector<8x512xf32>, vector<8x512xf32>, vector<8x512xf32>, vector<8x512xf32>, vector<8x512xf32> -> vector<72x512xf32>
    %cst_25 = arith.constant dense<0.000000e+00> : vector<8x512xf32>
    %73 = tpu.matmul %47, %72, %cst_25 {dimension_numbers = #tpu.dot_dimension_numbers<[1], [0], [0], [1], [0, 0, 1, 1], [], []>} : vector<8x72xf32>, vector<72x512xf32>, vector<8x512xf32> -> vector<8x512xf32>
    %74 = vector.extract_strided_slice %46 {offsets = [0, 0], sizes = [8, 1], strides = [1, 1]} : vector<8x4xf32> to vector<8x1xf32>
    %75 = vector.extract_strided_slice %46 {offsets = [0, 1], sizes = [8, 1], strides = [1, 1]} : vector<8x4xf32> to vector<8x1xf32>
    %cst_26 = arith.constant dense<0.000000e+00> : vector<8xf32>
    %76 = vector.multi_reduction <add>, %73, %cst_26 [1] : vector<8x512xf32> to vector<8xf32>
    %77 = vector.shape_cast %76 : vector<8xf32> to vector<8x1xf32>
    %78 = arith.mulf %73, %73 : vector<8x512xf32>
    %cst_27 = arith.constant dense<0.000000e+00> : vector<8xf32>
    %79 = vector.multi_reduction <add>, %78, %cst_27 [1] : vector<8x512xf32> to vector<8xf32>
    %80 = vector.shape_cast %79 : vector<8xf32> to vector<8x1xf32>
    %cst_28 = arith.constant 0.001953125 : f32
    %81 = vector.broadcast %cst_28 : f32 to vector<8x1xf32>
    %82 = arith.mulf %77, %81 : vector<8x1xf32>
    %cst_29 = arith.constant 0.001953125 : f32
    %83 = vector.broadcast %cst_29 : f32 to vector<8x1xf32>
    %84 = arith.mulf %80, %83 : vector<8x1xf32>
    %85 = arith.mulf %82, %82 : vector<8x1xf32>
    %86 = arith.subf %84, %85 : vector<8x1xf32>
    %cst_30 = arith.constant 0.000000e+00 : f32
    %87 = vector.broadcast %cst_30 : f32 to vector<8x1xf32>
    %88 = arith.maximumf %86, %87 : vector<8x1xf32>
    %cst_31 = arith.constant 9.99999974E-6 : f32
    %89 = vector.broadcast %cst_31 : f32 to vector<8x1xf32>
    %90 = arith.addf %88, %89 : vector<8x1xf32>
    %91 = math.rsqrt %90 : vector<8x1xf32>
    %92 = arith.mulf %74, %91 : vector<8x1xf32>
    %93 = arith.mulf %82, %92 : vector<8x1xf32>
    %94 = arith.subf %75, %93 : vector<8x1xf32>
    %95 = vector.broadcast %92 : vector<8x1xf32> to vector<8x512xf32>
    %96 = arith.mulf %73, %95 : vector<8x512xf32>
    %97 = vector.broadcast %94 : vector<8x1xf32> to vector<8x512xf32>
    %98 = arith.addf %96, %97 : vector<8x512xf32>
    %cst_32 = arith.constant 0.000000e+00 : f32
    %99 = vector.broadcast %cst_32 : f32 to vector<8x512xf32>
    %100 = arith.maximumf %98, %99 : vector<8x512xf32>
    %c0_33 = arith.constant 0 : index
    %c0_34 = arith.constant 0 : index
    %101 = vector.load %arg2[%c0_33, %c0_34] : memref<8x72xf32, #tpu.memory_space<vmem>>, vector<8x72xf32>
    %c17_i32_35 = arith.constant 17 : i32
    %102 = tpu.dynamic_rotate %100 by %c17_i32_35 dim 1 : vector<8x512xf32>, i32 -> vector<8x512xf32>
    %cst_36 = arith.constant 0.000000e+00 : f32
    %103 = vector.broadcast %cst_36 : f32 to vector<8x512xf32>
    %104 = arith.select %42, %102, %103 : vector<8x512xi1>, vector<8x512xf32>
    %c16_i32_37 = arith.constant 16 : i32
    %105 = tpu.dynamic_rotate %100 by %c16_i32_37 dim 1 : vector<8x512xf32>, i32 -> vector<8x512xf32>
    %cst_38 = arith.constant 0.000000e+00 : f32
    %106 = vector.broadcast %cst_38 : f32 to vector<8x512xf32>
    %107 = arith.select %35, %105, %106 : vector<8x512xi1>, vector<8x512xf32>
    %c15_i32_39 = arith.constant 15 : i32
    %108 = tpu.dynamic_rotate %100 by %c15_i32_39 dim 1 : vector<8x512xf32>, i32 -> vector<8x512xf32>
    %cst_40 = arith.constant 0.000000e+00 : f32
    %109 = vector.broadcast %cst_40 : f32 to vector<8x512xf32>
    %110 = arith.select %43, %108, %109 : vector<8x512xi1>, vector<8x512xf32>
    %c1_i32_41 = arith.constant 1 : i32
    %111 = tpu.dynamic_rotate %100 by %c1_i32_41 dim 1 : vector<8x512xf32>, i32 -> vector<8x512xf32>
    %cst_42 = arith.constant 0.000000e+00 : f32
    %112 = vector.broadcast %cst_42 : f32 to vector<8x512xf32>
    %113 = arith.select %39, %111, %112 : vector<8x512xi1>, vector<8x512xf32>
    %c511_i32_43 = arith.constant 511 : i32
    %114 = tpu.dynamic_rotate %100 by %c511_i32_43 dim 1 : vector<8x512xf32>, i32 -> vector<8x512xf32>
    %cst_44 = arith.constant 0.000000e+00 : f32
    %115 = vector.broadcast %cst_44 : f32 to vector<8x512xf32>
    %116 = arith.select %41, %114, %115 : vector<8x512xi1>, vector<8x512xf32>
    %c497_i32_45 = arith.constant 497 : i32
    %117 = tpu.dynamic_rotate %100 by %c497_i32_45 dim 1 : vector<8x512xf32>, i32 -> vector<8x512xf32>
    %cst_46 = arith.constant 0.000000e+00 : f32
    %118 = vector.broadcast %cst_46 : f32 to vector<8x512xf32>
    %119 = arith.select %44, %117, %118 : vector<8x512xi1>, vector<8x512xf32>
    %c496_i32_47 = arith.constant 496 : i32
    %120 = tpu.dynamic_rotate %100 by %c496_i32_47 dim 1 : vector<8x512xf32>, i32 -> vector<8x512xf32>
    %cst_48 = arith.constant 0.000000e+00 : f32
    %121 = vector.broadcast %cst_48 : f32 to vector<8x512xf32>
    %122 = arith.select %37, %120, %121 : vector<8x512xi1>, vector<8x512xf32>
    %c495_i32_49 = arith.constant 495 : i32
    %123 = tpu.dynamic_rotate %100 by %c495_i32_49 dim 1 : vector<8x512xf32>, i32 -> vector<8x512xf32>
    %cst_50 = arith.constant 0.000000e+00 : f32
    %124 = vector.broadcast %cst_50 : f32 to vector<8x512xf32>
    %125 = arith.select %45, %123, %124 : vector<8x512xi1>, vector<8x512xf32>
    %126 = tpu.concatenate %104, %107, %110, %113, %100, %116, %119, %122, %125 in 0 : vector<8x512xf32>, vector<8x512xf32>, vector<8x512xf32>, vector<8x512xf32>, vector<8x512xf32>, vector<8x512xf32>, vector<8x512xf32>, vector<8x512xf32>, vector<8x512xf32> -> vector<72x512xf32>
    %cst_51 = arith.constant dense<0.000000e+00> : vector<8x512xf32>
    %127 = tpu.matmul %101, %126, %cst_51 {dimension_numbers = #tpu.dot_dimension_numbers<[1], [0], [0], [1], [0, 0, 1, 1], [], []>} : vector<8x72xf32>, vector<72x512xf32>, vector<8x512xf32> -> vector<8x512xf32>
    %128 = vector.extract_strided_slice %46 {offsets = [0, 2], sizes = [8, 1], strides = [1, 1]} : vector<8x4xf32> to vector<8x1xf32>
    %129 = vector.extract_strided_slice %46 {offsets = [0, 3], sizes = [8, 1], strides = [1, 1]} : vector<8x4xf32> to vector<8x1xf32>
    %cst_52 = arith.constant dense<0.000000e+00> : vector<8xf32>
    %130 = vector.multi_reduction <add>, %127, %cst_52 [1] : vector<8x512xf32> to vector<8xf32>
    %131 = vector.shape_cast %130 : vector<8xf32> to vector<8x1xf32>
    %132 = arith.mulf %127, %127 : vector<8x512xf32>
    %cst_53 = arith.constant dense<0.000000e+00> : vector<8xf32>
    %133 = vector.multi_reduction <add>, %132, %cst_53 [1] : vector<8x512xf32> to vector<8xf32>
    %134 = vector.shape_cast %133 : vector<8xf32> to vector<8x1xf32>
    %cst_54 = arith.constant 0.001953125 : f32
    %135 = vector.broadcast %cst_54 : f32 to vector<8x1xf32>
    %136 = arith.mulf %131, %135 : vector<8x1xf32>
    %cst_55 = arith.constant 0.001953125 : f32
    %137 = vector.broadcast %cst_55 : f32 to vector<8x1xf32>
    %138 = arith.mulf %134, %137 : vector<8x1xf32>
    %139 = arith.mulf %136, %136 : vector<8x1xf32>
    %140 = arith.subf %138, %139 : vector<8x1xf32>
    %cst_56 = arith.constant 0.000000e+00 : f32
    %141 = vector.broadcast %cst_56 : f32 to vector<8x1xf32>
    %142 = arith.maximumf %140, %141 : vector<8x1xf32>
    %cst_57 = arith.constant 9.99999974E-6 : f32
    %143 = vector.broadcast %cst_57 : f32 to vector<8x1xf32>
    %144 = arith.addf %142, %143 : vector<8x1xf32>
    %145 = math.rsqrt %144 : vector<8x1xf32>
    %146 = arith.mulf %128, %145 : vector<8x1xf32>
    %147 = arith.mulf %136, %146 : vector<8x1xf32>
    %148 = arith.subf %129, %147 : vector<8x1xf32>
    %149 = vector.broadcast %146 : vector<8x1xf32> to vector<8x512xf32>
    %150 = arith.mulf %127, %149 : vector<8x512xf32>
    %151 = vector.broadcast %148 : vector<8x1xf32> to vector<8x512xf32>
    %152 = arith.addf %150, %151 : vector<8x512xf32>
    %cst_58 = arith.constant 0.000000e+00 : f32
    %153 = vector.broadcast %cst_58 : f32 to vector<8x512xf32>
    %154 = arith.maximumf %152, %153 : vector<8x512xf32>
    %155 = arith.addf %154, %0 : vector<8x512xf32>
    %c0_59 = arith.constant 0 : index
    %c0_60 = arith.constant 0 : index
    %156 = vector.load %arg4[%c0_59, %c0_60] : memref<8x512xf32, #tpu.memory_space<vmem>>, vector<8x512xf32>
    tpu.vector_store %arg4[%c0_59, %c0_60], %155 {strides = array<i32>} : memref<8x512xf32, #tpu.memory_space<vmem>>, vector<8x512xf32>,
    return
  }
}

</mosaic_0001>

<llo_original>
// kernel: tpu_custom_call.1
$region0: #{tpu_custom_call.1}
  #allocation0 [shape = 'u32[]', space=smem, size = 0x4, offset = 0x4, fixed_abs, tag = 'smem constant byte address 0x4 - core index']
  #allocation1 [shape = 'u32[144,128]{1,0:T(1,128)}', space=vmem, size = 0x12000, scoped, tag = 'internal scratch']
  %s0 = inlined_call_operand.hbm [shape: f32[8,512], index: 0, kind: input, shape index: {}]
  %s1 = inlined_call_operand.vmem [shape: f32[8,72], index: 1, kind: input, shape index: {}]
  %s2 = inlined_call_operand.vmem [shape: f32[8,72], index: 2, kind: input, shape index: {}]
  %s3 = inlined_call_operand.vmem [shape: f32[8,4], index: 3, kind: input, shape index: {}]
  %s4 = inlined_call_operand.hbm [shape: f32[8,512], index: 4, kind: output, shape index: {}]
  %s5 = sld [smem:[#allocation0]]
  $region30: #{tpu_custom_call.1} parent=0
    _
  %s7 = ssub.s32 1, %s5
  %s8 = scalar_select 0, %s7, %s5
  $region1: #{tpu_custom_call.1} parent=0
    #allocation2 [shape = 'u8[16384]{0}', space=vmem, size = 0x4000, scoped, tag = 'input window, operand 0, single buffered']
    #allocation3 [shape = 's32[1]{0}', space=sflag, size = 0x4, scoped, tag = 'scoped memory for tpu_custom_call.1']
    #allocation4 [shape = 's32[1]{0}', space=sflag, size = 0x4, scoped, tag = 'scoped memory for tpu_custom_call.1']
    #allocation5 [shape = 'u8[16384]{0}', space=vmem, size = 0x4000, scoped, tag = 'output window, operand 0, single buffered']
    %9 = vsyncpa [#allocation3], 0
    %10 = vsyncpa [#allocation4], 0
    // Predicated region
    $region2: #{tpu_custom_call.1} parent=1 // pred_check
      _
    $region3: #{tpu_custom_call.1} parent=1 // pred_check_branch
      %12 = sbr.rel (0) target = $region5
    $region4: #{tpu_custom_call.1} parent=1 // pred_region
      %s14 = ssub.s32 512, 512
      %15 = vsyncadd [#allocation3], %s14
      %s17 = sshll.u32 [#allocation2], 4
      %s18 = int_to_ptr.vmem [resolvable:$true] %s17
      %20 = dma.hbm_to_vmem [thread:$0]  %s0, 512, %s18, [#allocation3]
    $region5: #{tpu_custom_call.1} parent=1 // pred_fallthru
      _
    // Predicated region
    $region6: #{tpu_custom_call.1} parent=1 // pred_check
      _
    $region7: #{tpu_custom_call.1} parent=1 // pred_check_branch
      %22 = sbr.rel (0) target = $region9
    $region8: #{tpu_custom_call.1} parent=1 // pred_region
      _
    $region9: #{tpu_custom_call.1} parent=1 // pred_fallthru
      _
    // Predicated region
    $region10: #{tpu_custom_call.1} parent=1 // pred_check
      _
    $region11: #{tpu_custom_call.1} parent=1 // pred_check_branch
      %24 = sbr.rel (0) target = $region13
    $region12: #{tpu_custom_call.1} parent=1 // pred_region
      _
    $region13: #{tpu_custom_call.1} parent=1 // pred_fallthru
      _
    // Predicated region
    $region14: #{tpu_custom_call.1} parent=1 // pred_check
      _
    $region15: #{tpu_custom_call.1} parent=1 // pred_check_branch
      %26 = sbr.rel (0) target = $region17
    $region16: #{tpu_custom_call.1} parent=1 // pred_region
      _
    $region17: #{tpu_custom_call.1} parent=1 // pred_fallthru
      _
    // Predicated region
    $region18: #{tpu_custom_call.1} parent=1 // pred_check
      _
    $region19: #{tpu_custom_call.1} parent=1 // pred_check_branch
      %28 = sbr.rel (0) target = $region21
    $region20: #{tpu_custom_call.1} parent=1 // pred_region
      %29 = dma.done [#allocation3], 512
    $region21: #{tpu_custom_call.1} parent=1 // pred_fallthru
      _
    %v30 = vld [vmem:[#allocation2] sm:$0xff]
    %v31 = vld [vmem:[#allocation2 + $0x8] sm:$0xff]
    %v32 = vld [vmem:[#allocation2 + $0x10] sm:$0xff]
    %v33 = vld [vmem:[#allocation2 + $0x18] sm:$0xff]
    %v34 = vlaneseq
    %v35 = vand.u32 %v34, 127
    %v36 = vadd.s32 %v35, 128
    %v37 = vadd.s32 %v35, 256
    %v38 = vadd.s32 %v35, 384
    %vm39 = vcmp.lt.s32.totalorder %v35, 0
    %v40 = vsub.s32 0, %v35
    %v41 = vsel %vm39, %v40, %v35
    %v42 = vshrl.u32 %v41, 8
    %v43 = vand.u32 %v41, 255
    %v44 = vsub.s32 0, %v43
    %v45 = vsel %vm39, %v44, %v43
    %vm46 = vcmp.lt.s32.totalorder %v36, 0
    %v47 = vsub.s32 0, %v36
    %v48 = vsel %vm46, %v47, %v36
    %v49 = vshrl.u32 %v48, 8
    %v50 = vand.u32 %v48, 255
    %v51 = vsub.s32 0, %v50
    %v52 = vsel %vm46, %v51, %v50
    %vm53 = vcmp.lt.s32.totalorder %v37, 0
    %v54 = vsub.s32 0, %v37
    %v55 = vsel %vm53, %v54, %v37
    %v56 = vshrl.u32 %v55, 8
    %v57 = vand.u32 %v55, 255
    %v58 = vsub.s32 0, %v57
    %v59 = vsel %vm53, %v58, %v57
    %vm60 = vcmp.lt.s32.totalorder %v38, 0
    %v61 = vsub.s32 0, %v38
    %v62 = vsel %vm60, %v61, %v38
    %v63 = vshrl.u32 %v62, 8
    %v64 = vand.u32 %v62, 255
    %v65 = vsub.s32 0, %v64
    %v66 = vsel %vm60, %v65, %v64
    %vm67 = vcmp.ne.s32.totalorder %v45, 0
    %vm68 = vcmp.ne.s32.totalorder %v52, 0
    %vm69 = vcmp.ne.s32.totalorder %v59, 0
    %vm70 = vcmp.ne.s32.totalorder %v66, 0
    %vm71 = vcmp.lt.s32.totalorder %v45, 0
    %vm72 = vcmp.lt.s32.totalorder %v52, 0
    %vm73 = vcmp.lt.s32.totalorder %v59, 0
    %vm74 = vcmp.lt.s32.totalorder %v66, 0
    %vm75 = vmand %vm71, %vm67
    %vm76 = vmand %vm72, %vm68
    %vm77 = vmand %vm73, %vm69
    %vm78 = vmand %vm74, %vm70
    %v79 = vadd.s32 %v45, 256
    %v80 = vadd.s32 %v52, 256
    %v81 = vadd.s32 %v59, 256
    %v82 = vadd.s32 %v66, 256
    %v83 = vsel %vm75, %v79, %v45
    %v84 = vsel %vm76, %v80, %v52
    %v85 = vsel %vm77, %v81, %v59
    %v86 = vsel %vm78, %v82, %v66
    %vm87 = vcmp.lt.s32.totalorder %v35, 0
    %v88 = vsub.s32 0, %v35
    %v89 = vsel %vm87, %v88, %v35
    %v90 = vshrl.u32 %v89, 4
    %v91 = vand.u32 %v89, 15
    %v92 = vsub.s32 0, %v91
    %v93 = vsel %vm87, %v92, %v91
    %vm94 = vcmp.lt.s32.totalorder %v36, 0
    %v95 = vsub.s32 0, %v36
    %v96 = vsel %vm94, %v95, %v36
    %v97 = vshrl.u32 %v96, 4
    %v98 = vand.u32 %v96, 15
    %v99 = vsub.s32 0, %v98
    %v100 = vsel %vm94, %v99, %v98
    %vm101 = vcmp.lt.s32.totalorder %v37, 0
    %v102 = vsub.s32 0, %v37
    %v103 = vsel %vm101, %v102, %v37
    %v104 = vshrl.u32 %v103, 4
    %v105 = vand.u32 %v103, 15
    %v106 = vsub.s32 0, %v105
    %v107 = vsel %vm101, %v106, %v105
    %vm108 = vcmp.lt.s32.totalorder %v38, 0
    %v109 = vsub.s32 0, %v38
    %v110 = vsel %vm108, %v109, %v38
    %v111 = vshrl.u32 %v110, 4
    %v112 = vand.u32 %v110, 15
    %v113 = vsub.s32 0, %v112
    %v114 = vsel %vm108, %v113, %v112
    %vm115 = vcmp.ne.s32.totalorder %v93, 0
    %vm116 = vcmp.ne.s32.totalorder %v100, 0
    %vm117 = vcmp.ne.s32.totalorder %v107, 0
    %vm118 = vcmp.ne.s32.totalorder %v114, 0
    %vm119 = vcmp.lt.s32.totalorder %v93, 0
    %vm120 = vcmp.lt.s32.totalorder %v100, 0
    %vm121 = vcmp.lt.s32.totalorder %v107, 0
    %vm122 = vcmp.lt.s32.totalorder %v114, 0
    %vm123 = vmand %vm119, %vm115
    %vm124 = vmand %vm120, %vm116
    %vm125 = vmand %vm121, %vm117
    %vm126 = vmand %vm122, %vm118
    %v127 = vadd.s32 %v93, 16
    %v128 = vadd.s32 %v100, 16
    %v129 = vadd.s32 %v107, 16
    %v130 = vadd.s32 %v114, 16
    %v131 = vsel %vm123, %v127, %v93
    %v132 = vsel %vm124, %v128, %v100
    %v133 = vsel %vm125, %v129, %v107
    %v134 = vsel %vm126, %v130, %v114
    %vm135 = vcmp.ge.s32.totalorder %v83, 16
    %vm136 = vcmp.ge.s32.totalorder %v84, 16
    %vm137 = vcmp.ge.s32.totalorder %v85, 16
    %vm138 = vcmp.ge.s32.totalorder %v86, 16
    %vm139 = vcmp.lt.s32.totalorder %v83, 240
    %vm140 = vcmp.lt.s32.totalorder %v84, 240
    %vm141 = vcmp.lt.s32.totalorder %v85, 240
    %vm142 = vcmp.lt.s32.totalorder %v86, 240
    %vm143 = vcmp.ne.s32.totalorder %v131, 0
    %vm144 = vcmp.ne.s32.totalorder %v132, 0
    %vm145 = vcmp.ne.s32.totalorder %v133, 0
    %vm146 = vcmp.ne.s32.totalorder %v134, 0
    %vm147 = vcmp.ne.s32.totalorder %v131, 15
    %vm148 = vcmp.ne.s32.totalorder %v132, 15
    %vm149 = vcmp.ne.s32.totalorder %v133, 15
    %vm150 = vcmp.ne.s32.totalorder %v134, 15
    %vm151 = vmand %vm135, %vm143
    %vm152 = vmand %vm136, %vm144
    %vm153 = vmand %vm137, %vm145
    %vm154 = vmand %vm138, %vm146
    %vm155 = vmand %vm135, %vm147
    %vm156 = vmand %vm136, %vm148
    %vm157 = vmand %vm137, %vm149
    %vm158 = vmand %vm138, %vm150
    %vm159 = vmand %vm139, %vm143
    %vm160 = vmand %vm140, %vm144
    %vm161 = vmand %vm141, %vm145
    %vm162 = vmand %vm142, %vm146
    %vm163 = vmand %vm139, %vm147
    %vm164 = vmand %vm140, %vm148
    %vm165 = vmand %vm141, %vm149
    %vm166 = vmand %vm142, %vm150
    %v167 = vld [vmem:[%s3] sm:$0xff]
    %v168 = vld [vmem:[%s1] sm:$0xff]
    %169 = vrot.lane.b32.xlu0 %v30, 17
    %v170 = vpop.permute.xlu0 %169
    %171 = vrot.lane.b32.xlu0 %v31, 17
    %v172 = vpop.permute.xlu0 %171
    %173 = vrot.lane.b32.xlu0 %v32, 17
    %v174 = vpop.permute.xlu0 %173
    %175 = vrot.lane.b32.xlu0 %v33, 17
    %v176 = vpop.permute.xlu0 %175
    %vm177 = vcmp.lt.s32.totalorder %v35, 17
    %v178 = vsel %vm177, %v174, %v176
    %v179 = vsel %vm177, %v172, %v174
    %v180 = vsel %vm177, %v170, %v172
    %v181 = vsel %vm177, %v176, %v170
    %v182 = vsel %vm151, %v181, 0.0
    %v183 = vsel %vm152, %v180, 0.0
    %v184 = vsel %vm153, %v179, 0.0
    %v185 = vsel %vm154, %v178, 0.0
    %186 = vrot.lane.b32.xlu0 %v30, 16
    %v187 = vpop.permute.xlu0 %186
    %188 = vrot.lane.b32.xlu0 %v31, 16
    %v189 = vpop.permute.xlu0 %188
    %190 = vrot.lane.b32.xlu0 %v32, 16
    %v191 = vpop.permute.xlu0 %190
    %192 = vrot.lane.b32.xlu0 %v33, 16
    %v193 = vpop.permute.xlu0 %192
    %vm194 = vcmp.lt.s32.totalorder %v35, 16
    %v195 = vsel %vm194, %v191, %v193
    %v196 = vsel %vm194, %v189, %v191
    %v197 = vsel %vm194, %v187, %v189
    %v198 = vsel %vm194, %v193, %v187
    %v199 = vsel %vm135, %v198, 0.0
    %v200 = vsel %vm136, %v197, 0.0
    %v201 = vsel %vm137, %v196, 0.0
    %v202 = vsel %vm138, %v195, 0.0
    %203 = vrot.lane.b32.xlu0 %v30, 15
    %v204 = vpop.permute.xlu0 %203
    %205 = vrot.lane.b32.xlu0 %v31, 15
    %v206 = vpop.permute.xlu0 %205
    %207 = vrot.lane.b32.xlu0 %v32, 15
    %v208 = vpop.permute.xlu0 %207
    %209 = vrot.lane.b32.xlu0 %v33, 15
    %v210 = vpop.permute.xlu0 %209
    %vm211 = vcmp.lt.s32.totalorder %v35, 15
    %v212 = vsel %vm211, %v208, %v210
    %v213 = vsel %vm211, %v206, %v208
    %v214 = vsel %vm211, %v204, %v206
    %v215 = vsel %vm211, %v210, %v204
    %v216 = vsel %vm155, %v215, 0.0
    %v217 = vsel %vm156, %v214, 0.0
    %v218 = vsel %vm157, %v213, 0.0
    %v219 = vsel %vm158, %v212, 0.0
    %220 = vrot.lane.b32.xlu0 %v30, 1
    %v221 = vpop.permute.xlu0 %220
    %222 = vrot.lane.b32.xlu0 %v31, 1
    %v223 = vpop.permute.xlu0 %222
    %224 = vrot.lane.b32.xlu0 %v32, 1
    %v225 = vpop.permute.xlu0 %224
    %226 = vrot.lane.b32.xlu0 %v33, 1
    %v227 = vpop.permute.xlu0 %226
    %vm228 = vcmp.lt.s32.totalorder %v35, 1
    %v229 = vsel %vm228, %v225, %v227
    %v230 = vsel %vm228, %v223, %v225
    %v231 = vsel %vm228, %v221, %v223
    %v232 = vsel %vm228, %v227, %v221
    %v233 = vsel %vm143, %v232, 0.0
    %v234 = vsel %vm144, %v231, 0.0
    %v235 = vsel %vm145, %v230, 0.0
    %v236 = vsel %vm146, %v229, 0.0
    %237 = vrot.lane.b32.xlu0 %v30, 127
    %v238 = vpop.permute.xlu0 %237
    %239 = vrot.lane.b32.xlu0 %v31, 127
    %v240 = vpop.permute.xlu0 %239
    %241 = vrot.lane.b32.xlu0 %v32, 127
    %v242 = vpop.permute.xlu0 %241
    %243 = vrot.lane.b32.xlu0 %v33, 127
    %v244 = vpop.permute.xlu0 %243
    %vm245 = vcmp.lt.s32.totalorder %v35, 127
    %v246 = vsel %vm245, %v242, %v244
    %v247 = vsel %vm245, %v240, %v242
    %v248 = vsel %vm245, %v238, %v240
    %v249 = vsel %vm245, %v244, %v238
    %v250 = vsel %vm147, %v248, 0.0
    %v251 = vsel %vm148, %v247, 0.0
    %v252 = vsel %vm149, %v246, 0.0
    %v253 = vsel %vm150, %v249, 0.0
    %254 = vrot.lane.b32.xlu0 %v30, 113
    %v255 = vpop.permute.xlu0 %254
    %256 = vrot.lane.b32.xlu0 %v31, 113
    %v257 = vpop.permute.xlu0 %256
    %258 = vrot.lane.b32.xlu0 %v32, 113
    %v259 = vpop.permute.xlu0 %258
    %260 = vrot.lane.b32.xlu0 %v33, 113
    %v261 = vpop.permute.xlu0 %260
    %vm262 = vcmp.lt.s32.totalorder %v35, 113
    %v263 = vsel %vm262, %v259, %v261
    %v264 = vsel %vm262, %v257, %v259
    %v265 = vsel %vm262, %v255, %v257
    %v266 = vsel %vm262, %v261, %v255
    %v267 = vsel %vm159, %v265, 0.0
    %v268 = vsel %vm160, %v264, 0.0
    %v269 = vsel %vm161, %v263, 0.0
    %v270 = vsel %vm162, %v266, 0.0
    %271 = vrot.lane.b32.xlu0 %v30, 112
    %v272 = vpop.permute.xlu0 %271
    %273 = vrot.lane.b32.xlu0 %v31, 112
    %v274 = vpop.permute.xlu0 %273
    %275 = vrot.lane.b32.xlu0 %v32, 112
    %v276 = vpop.permute.xlu0 %275
    %277 = vrot.lane.b32.xlu0 %v33, 112
    %v278 = vpop.permute.xlu0 %277
    %vm279 = vcmp.lt.s32.totalorder %v35, 112
    %v280 = vsel %vm279, %v276, %v278
    %v281 = vsel %vm279, %v274, %v276
    %v282 = vsel %vm279, %v272, %v274
    %v283 = vsel %vm279, %v278, %v272
    %v284 = vsel %vm139, %v282, 0.0
    %v285 = vsel %vm140, %v281, 0.0
    %v286 = vsel %vm141, %v280, 0.0
    %v287 = vsel %vm142, %v283, 0.0
    %288 = vrot.lane.b32.xlu0 %v30, 111
    %v289 = vpop.permute.xlu0 %288
    %290 = vrot.lane.b32.xlu0 %v31, 111
    %v291 = vpop.permute.xlu0 %290
    %292 = vrot.lane.b32.xlu0 %v32, 111
    %v293 = vpop.permute.xlu0 %292
    %294 = vrot.lane.b32.xlu0 %v33, 111
    %v295 = vpop.permute.xlu0 %294
    %vm296 = vcmp.lt.s32.totalorder %v35, 111
    %v297 = vsel %vm296, %v293, %v295
    %v298 = vsel %vm296, %v291, %v293
    %v299 = vsel %vm296, %v289, %v291
    %v300 = vsel %vm296, %v295, %v289
    %v301 = vsel %vm163, %v299, 0.0
    %v302 = vsel %vm164, %v298, 0.0
    %v303 = vsel %vm165, %v297, 0.0
    %v304 = vsel %vm166, %v300, 0.0
    %vm305 = vcmask 588800
    %v307 = vsel %vm305, %v168, 0
    %309 = vmatprep.subr.mxu0 %v183
    %310 = vmatpush1.msra.mxu0 %v182
    %311 = vmatprep.subr.mxu0 %v200
    %312 = vmatpush1.msra.mxu0 %v199
    %313 = vmatprep.subr.mxu0 %v217
    %314 = vmatpush1.msra.mxu0 %v216
    %315 = vmatprep.subr.mxu0 %v234
    %316 = vmatpush1.msra.mxu0 %v233
    %317 = vmatprep.subr.mxu0 %v31
    %318 = vmatpush1.msra.mxu0 %v30
    %319 = vmatprep.subr.mxu0 %v251
    %320 = vmatpush1.msra.mxu0 %v250
    %321 = vmatprep.subr.mxu0 %v268
    %322 = vmatpush1.msra.mxu0 %v267
    %323 = vmatprep.subr.mxu0 %v285
    %324 = vmatpush1.msra.mxu0 %v284
    %325 = vmatprep.subr.mxu0 %v302
    %326 = vmatpush1.msra.mxu0 %v301
    %327 = vmatprep.subr.mxu0 0.0
    %328 = vmatpush1.msra.mxu0 0.0
    %329 = vmatprep.subr.mxu0 0.0
    %330 = vmatpush1.msra.mxu0 0.0
    %331 = vmatprep.subr.mxu0 0.0
    %332 = vmatpush1.msra.mxu0 0.0
    %333 = vmatprep.subr.mxu0 0.0
    %334 = vmatpush1.msra.mxu0 0.0
    %335 = vmatprep.subr.mxu0 0.0
    %336 = vmatpush1.msra.mxu0 0.0
    %337 = vmatprep.subr.mxu0 0.0
    %338 = vmatpush1.msra.mxu0 0.0
    %339 = vmatprep.subr.mxu0 0.0
    %340 = vmatpush1.msra.mxu0 0.0
    %341 = vmatprep.subr.mxu0 0.0
    %342 = vmatpush1.msra.mxu0 0.0
    %343 = vmatprep.subr.mxu0 0.0
    %344 = vmatpush1.msra.mxu0 0.0
    %345 = vmatprep.subr.mxu0 0.0
    %346 = vmatpush1.msra.mxu0 0.0
    %347 = vmatprep.subr.mxu0 0.0
    %348 = vmatpush1.msra.mxu0 0.0
    %349 = vmatprep.subr.mxu0 0.0
    %350 = vmatpush1.msra.mxu0 0.0
    %351 = vmatprep.subr.mxu0 0.0
    %352 = vmatpush1.msra.mxu0 0.0
    %353 = vmatprep.subr.mxu0 0.0
    %354 = vmatpush1.msra.mxu0 0.0
    %355 = vmatprep.subr.mxu0 0.0
    %356 = vmatpush1.msra.mxu0 0.0
    %357 = vmatprep.subr.mxu0 0.0
    %358 = vmatpush1.msra.mxu0 0.0
    %359 = vmatprep.subr.mxu0 0.0
    %360 = vmatpush1.msra.mxu0 0.0
    %361 = vmatprep.subr.mxu0 0.0
    %362 = vmatpush1.msra.mxu0 0.0
    %363 = vmatprep.subr.mxu0 0.0
    %364 = vmatpush1.msra.mxu0 0.0
    %365 = vmatprep.subr.mxu0 0.0
    %366 = vmatpush1.msra.mxu0 0.0
    %367 = vmatprep.subr.mxu0 0.0
    %368 = vmatpush1.msra.mxu0 0.0
    %369 = vmatprep.subr.mxu0 0.0
    %370 = vmatpush1.msra.mxu0 0.0
    %371 = vmatprep.subr.mxu0 0.0
    %372 = vmatpush1.msra.mxu0 0.0
    %373 = vmatprep.mubr.f32.mxu0 0.0
    %374 = vmatmul.mubr.f32.gmra.mrb[0].mxu0 %v307
    %v375 = vpop.f32.mrb[0].mxu0
    %v376 = vadd.f32 0.0, %v375
    %v377 = vpop.f32.mrb[0].mxu0
    %v378 = vadd.f32 0.0, %v377
    %379 = vdwg.mxu0
    %380 = vmatprep.subr.mxu0 %v185
    %381 = vmatpush1.msra.mxu0 %v184
    %382 = vmatprep.subr.mxu0 %v202
    %383 = vmatpush1.msra.mxu0 %v201
    %384 = vmatprep.subr.mxu0 %v219
    %385 = vmatpush1.msra.mxu0 %v218
    %386 = vmatprep.subr.mxu0 %v236
    %387 = vmatpush1.msra.mxu0 %v235
    %388 = vmatprep.subr.mxu0 %v33
    %389 = vmatpush1.msra.mxu0 %v32
    %390 = vmatprep.subr.mxu0 %v253
    %391 = vmatpush1.msra.mxu0 %v252
    %392 = vmatprep.subr.mxu0 %v270
    %393 = vmatpush1.msra.mxu0 %v269
    %394 = vmatprep.subr.mxu0 %v287
    %395 = vmatpush1.msra.mxu0 %v286
    %396 = vmatprep.subr.mxu0 %v304
    %397 = vmatpush1.msra.mxu0 %v303
    %398 = vmatprep.subr.mxu0 0.0
    %399 = vmatpush1.msra.mxu0 0.0
    %400 = vmatprep.subr.mxu0 0.0
    %401 = vmatpush1.msra.mxu0 0.0
    %402 = vmatprep.subr.mxu0 0.0
    %403 = vmatpush1.msra.mxu0 0.0
    %404 = vmatprep.subr.mxu0 0.0
    %405 = vmatpush1.msra.mxu0 0.0
    %406 = vmatprep.subr.mxu0 0.0
    %407 = vmatpush1.msra.mxu0 0.0
    %408 = vmatprep.subr.mxu0 0.0
    %409 = vmatpush1.msra.mxu0 0.0
    %410 = vmatprep.subr.mxu0 0.0
    %411 = vmatpush1.msra.mxu0 0.0
    %412 = vmatprep.subr.mxu0 0.0
    %413 = vmatpush1.msra.mxu0 0.0
    %414 = vmatprep.subr.mxu0 0.0
    %415 = vmatpush1.msra.mxu0 0.0
    %416 = vmatprep.subr.mxu0 0.0
    %417 = vmatpush1.msra.mxu0 0.0
    %418 = vmatprep.subr.mxu0 0.0
    %419 = vmatpush1.msra.mxu0 0.0
    %420 = vmatprep.subr.mxu0 0.0
    %421 = vmatpush1.msra.mxu0 0.0
    %422 = vmatprep.subr.mxu0 0.0
    %423 = vmatpush1.msra.mxu0 0.0
    %424 = vmatprep.subr.mxu0 0.0
    %425 = vmatpush1.msra.mxu0 0.0
    %426 = vmatprep.subr.mxu0 0.0
    %427 = vmatpush1.msra.mxu0 0.0
    %428 = vmatprep.subr.mxu0 0.0
    %429 = vmatpush1.msra.mxu0 0.0
    %430 = vmatprep.subr.mxu0 0.0
    %431 = vmatpush1.msra.mxu0 0.0
    %432 = vmatprep.subr.mxu0 0.0
    %433 = vmatpush1.msra.mxu0 0.0
    %434 = vmatprep.subr.mxu0 0.0
    %435 = vmatpush1.msra.mxu0 0.0
    %436 = vmatprep.subr.mxu0 0.0
    %437 = vmatpush1.msra.mxu0 0.0
    %438 = vmatprep.subr.mxu0 0.0
    %439 = vmatpush1.msra.mxu0 0.0
    %440 = vmatprep.subr.mxu0 0.0
    %441 = vmatpush1.msra.mxu0 0.0
    %442 = vmatprep.subr.mxu0 0.0
    %443 = vmatpush1.msra.mxu0 0.0
    %444 = vmatprep.mubr.f32.mxu0 0.0
    %445 = vmatmul.mubr.f32.gmra.mrb[0].mxu0 %v307
    %v446 = vpop.f32.mrb[0].mxu0
    %v447 = vadd.f32 0.0, %v446
    %v448 = vpop.f32.mrb[0].mxu0
    %v449 = vadd.f32 0.0, %v448
    %450 = vdwg.mxu0
    %v451 = vadd.f32 %v376, %v378
    %v452 = vadd.f32 %v451, %v447
    %v453 = vadd.f32 %v452, %v449
    %454 = vadd.xlane.f32.xlu0 %v453
    %v455 = vpop.xlane.xlu0 %454
    %v456 = vmul.f32 %v376, %v376
    %v457 = vmul.f32 %v378, %v378
    %v458 = vmul.f32 %v447, %v447
    %v459 = vmul.f32 %v449, %v449
    %v460 = vadd.f32 %v456, %v457
    %v461 = vadd.f32 %v460, %v458
    %v462 = vadd.f32 %v461, %v459
    %463 = vadd.xlane.f32.xlu0 %v462
    %v464 = vpop.xlane.xlu0 %463
    %v465 = vmul.f32 %v455, 0.001953125
    %v466 = vmul.f32 %v464, 0.001953125
    %v467 = vmul.f32 %v465, %v465
    %v468 = vsub.f32 %v466, %v467
    %v469 = vmax.f32 %v468, 0.0
    %v470 = vadd.f32 %v469, 1e-05
    %v471 = vrsqrt.pop %v470
    %v472 = vmul.f32 %v167, %v471
    %v473 = vmul.f32 %v465, %v472
    %475 = vrot.lane.b32.xlu0 %v473, 1
    %v476 = vpop.permute.xlu0 %475
    %v478 = vsub.f32 %v167, %v476
    %480 = vset.pattern.permute.xlu0 0
    %481 = vperm.xlu0 %480, %v472
    %v482 = vpop.permute.xlu0 %481
    %v484 = vmul.f32 %v376, %v482
    %v485 = vmul.f32 %v378, %v482
    %v486 = vmul.f32 %v447, %v482
    %v487 = vmul.f32 %v449, %v482
    %489 = vset.pattern.permute.xlu0 1
    %490 = vperm.xlu0 %489, %v478
    %v491 = vpop.permute.xlu0 %490
    %v493 = vadd.f32 %v484, %v491
    %v494 = vadd.f32 %v485, %v491
    %v495 = vadd.f32 %v486, %v491
    %v496 = vadd.f32 %v487, %v491
    %v497 = vmax.f32 %v493, 0.0
    %v498 = vmax.f32 %v494, 0.0
    %v499 = vmax.f32 %v495, 0.0
    %v500 = vmax.f32 %v496, 0.0
    %v501 = vld [vmem:[%s2] sm:$0xff]
    %502 = vrot.lane.b32.xlu0 %v497, 17
    %v503 = vpop.permute.xlu0 %502
    %504 = vrot.lane.b32.xlu0 %v498, 17
    %v505 = vpop.permute.xlu0 %504
    %506 = vrot.lane.b32.xlu0 %v499, 17
    %v507 = vpop.permute.xlu0 %506
    %508 = vrot.lane.b32.xlu0 %v500, 17
    %v509 = vpop.permute.xlu0 %508
    %v510 = vsel %vm177, %v507, %v509
    %v511 = vsel %vm177, %v505, %v507
    %v512 = vsel %vm177, %v503, %v505
    %v513 = vsel %vm177, %v509, %v503
    %v514 = vsel %vm151, %v513, 0.0
    %v515 = vsel %vm152, %v512, 0.0
    %v516 = vsel %vm153, %v511, 0.0
    %v517 = vsel %vm154, %v510, 0.0
    %518 = vrot.lane.b32.xlu0 %v497, 16
    %v519 = vpop.permute.xlu0 %518
    %520 = vrot.lane.b32.xlu0 %v498, 16
    %v521 = vpop.permute.xlu0 %520
    %522 = vrot.lane.b32.xlu0 %v499, 16
    %v523 = vpop.permute.xlu0 %522
    %524 = vrot.lane.b32.xlu0 %v500, 16
    %v525 = vpop.permute.xlu0 %524
    %v526 = vsel %vm194, %v523, %v525
    %v527 = vsel %vm194, %v521, %v523
    %v528 = vsel %vm194, %v519, %v521
    %v529 = vsel %vm194, %v525, %v519
    %v530 = vsel %vm135, %v529, 0.0
    %v531 = vsel %vm136, %v528, 0.0
    %v532 = vsel %vm137, %v527, 0.0
    %v533 = vsel %vm138, %v526, 0.0
    %534 = vrot.lane.b32.xlu0 %v497, 15
    %v535 = vpop.permute.xlu0 %534
    %536 = vrot.lane.b32.xlu0 %v498, 15
    %v537 = vpop.permute.xlu0 %536
    %538 = vrot.lane.b32.xlu0 %v499, 15
    %v539 = vpop.permute.xlu0 %538
    %540 = vrot.lane.b32.xlu0 %v500, 15
    %v541 = vpop.permute.xlu0 %540
    %v542 = vsel %vm211, %v539, %v541
    %v543 = vsel %vm211, %v537, %v539
    %v544 = vsel %vm211, %v535, %v537
    %v545 = vsel %vm211, %v541, %v535
    %v546 = vsel %vm155, %v545, 0.0
    %v547 = vsel %vm156, %v544, 0.0
    %v548 = vsel %vm157, %v543, 0.0
    %v549 = vsel %vm158, %v542, 0.0
    %550 = vrot.lane.b32.xlu0 %v497, 1
    %v551 = vpop.permute.xlu0 %550
    %552 = vrot.lane.b32.xlu0 %v498, 1
    %v553 = vpop.permute.xlu0 %552
    %554 = vrot.lane.b32.xlu0 %v499, 1
    %v555 = vpop.permute.xlu0 %554
    %556 = vrot.lane.b32.xlu0 %v500, 1
    %v557 = vpop.permute.xlu0 %556
    %v558 = vsel %vm228, %v555, %v557
    %v559 = vsel %vm228, %v553, %v555
    %v560 = vsel %vm228, %v551, %v553
    %v561 = vsel %vm228, %v557, %v551
    %v562 = vsel %vm143, %v561, 0.0
    %v563 = vsel %vm144, %v560, 0.0
    %v564 = vsel %vm145, %v559, 0.0
    %v565 = vsel %vm146, %v558, 0.0
    %566 = vrot.lane.b32.xlu0 %v497, 127
    %v567 = vpop.permute.xlu0 %566
    %568 = vrot.lane.b32.xlu0 %v498, 127
    %v569 = vpop.permute.xlu0 %568
    %570 = vrot.lane.b32.xlu0 %v499, 127
    %v571 = vpop.permute.xlu0 %570
    %572 = vrot.lane.b32.xlu0 %v500, 127
    %v573 = vpop.permute.xlu0 %572
    %v574 = vsel %vm245, %v571, %v573
    %v575 = vsel %vm245, %v569, %v571
    %v576 = vsel %vm245, %v567, %v569
    %v577 = vsel %vm245, %v573, %v567
    %v578 = vsel %vm147, %v576, 0.0
    %v579 = vsel %vm148, %v575, 0.0
    %v580 = vsel %vm149, %v574, 0.0
    %v581 = vsel %vm150, %v577, 0.0
    %582 = vrot.lane.b32.xlu0 %v497, 113
    %v583 = vpop.permute.xlu0 %582
    %584 = vrot.lane.b32.xlu0 %v498, 113
    %v585 = vpop.permute.xlu0 %584
    %586 = vrot.lane.b32.xlu0 %v499, 113
    %v587 = vpop.permute.xlu0 %586
    %588 = vrot.lane.b32.xlu0 %v500, 113
    %v589 = vpop.permute.xlu0 %588
    %v590 = vsel %vm262, %v587, %v589
    %v591 = vsel %vm262, %v585, %v587
    %v592 = vsel %vm262, %v583, %v585
    %v593 = vsel %vm262, %v589, %v583
    %v594 = vsel %vm159, %v592, 0.0
    %v595 = vsel %vm160, %v591, 0.0
    %v596 = vsel %vm161, %v590, 0.0
    %v597 = vsel %vm162, %v593, 0.0
    %598 = vrot.lane.b32.xlu0 %v497, 112
    %v599 = vpop.permute.xlu0 %598
    %600 = vrot.lane.b32.xlu0 %v498, 112
    %v601 = vpop.permute.xlu0 %600
    %602 = vrot.lane.b32.xlu0 %v499, 112
    %v603 = vpop.permute.xlu0 %602
    %604 = vrot.lane.b32.xlu0 %v500, 112
    %v605 = vpop.permute.xlu0 %604
    %v606 = vsel %vm279, %v603, %v605
    %v607 = vsel %vm279, %v601, %v603
    %v608 = vsel %vm279, %v599, %v601
    %v609 = vsel %vm279, %v605, %v599
    %v610 = vsel %vm139, %v608, 0.0
    %v611 = vsel %vm140, %v607, 0.0
    %v612 = vsel %vm141, %v606, 0.0
    %v613 = vsel %vm142, %v609, 0.0
    %614 = vrot.lane.b32.xlu0 %v497, 111
    %v615 = vpop.permute.xlu0 %614
    %616 = vrot.lane.b32.xlu0 %v498, 111
    %v617 = vpop.permute.xlu0 %616
    %618 = vrot.lane.b32.xlu0 %v499, 111
    %v619 = vpop.permute.xlu0 %618
    %620 = vrot.lane.b32.xlu0 %v500, 111
    %v621 = vpop.permute.xlu0 %620
    %v622 = vsel %vm296, %v619, %v621
    %v623 = vsel %vm296, %v617, %v619
    %v624 = vsel %vm296, %v615, %v617
    %v625 = vsel %vm296, %v621, %v615
    %v626 = vsel %vm163, %v624, 0.0
    %v627 = vsel %vm164, %v623, 0.0
    %v628 = vsel %vm165, %v622, 0.0
    %v629 = vsel %vm166, %v625, 0.0
    %v631 = vsel %vm305, %v501, 0
    %633 = vmatprep.subr.mxu0 %v515
    %634 = vmatpush1.msra.mxu0 %v514
    %635 = vmatprep.subr.mxu0 %v531
    %636 = vmatpush1.msra.mxu0 %v530
    %637 = vmatprep.subr.mxu0 %v547
    %638 = vmatpush1.msra.mxu0 %v546
    %639 = vmatprep.subr.mxu0 %v563
    %640 = vmatpush1.msra.mxu0 %v562
    %641 = vmatprep.subr.mxu0 %v498
    %642 = vmatpush1.msra.mxu0 %v497
    %643 = vmatprep.subr.mxu0 %v579
    %644 = vmatpush1.msra.mxu0 %v578
    %645 = vmatprep.subr.mxu0 %v595
    %646 = vmatpush1.msra.mxu0 %v594
    %647 = vmatprep.subr.mxu0 %v611
    %648 = vmatpush1.msra.mxu0 %v610
    %649 = vmatprep.subr.mxu0 %v627
    %650 = vmatpush1.msra.mxu0 %v626
    %651 = vmatprep.subr.mxu0 0.0
    %652 = vmatpush1.msra.mxu0 0.0
    %653 = vmatprep.subr.mxu0 0.0
    %654 = vmatpush1.msra.mxu0 0.0
    %655 = vmatprep.subr.mxu0 0.0
    %656 = vmatpush1.msra.mxu0 0.0
    %657 = vmatprep.subr.mxu0 0.0
    %658 = vmatpush1.msra.mxu0 0.0
    %659 = vmatprep.subr.mxu0 0.0
    %660 = vmatpush1.msra.mxu0 0.0
    %661 = vmatprep.subr.mxu0 0.0
    %662 = vmatpush1.msra.mxu0 0.0
    %663 = vmatprep.subr.mxu0 0.0
    %664 = vmatpush1.msra.mxu0 0.0
    %665 = vmatprep.subr.mxu0 0.0
    %666 = vmatpush1.msra.mxu0 0.0
    %667 = vmatprep.subr.mxu0 0.0
    %668 = vmatpush1.msra.mxu0 0.0
    %669 = vmatprep.subr.mxu0 0.0
    %670 = vmatpush1.msra.mxu0 0.0
    %671 = vmatprep.subr.mxu0 0.0
    %672 = vmatpush1.msra.mxu0 0.0
    %673 = vmatprep.subr.mxu0 0.0
    %674 = vmatpush1.msra.mxu0 0.0
    %675 = vmatprep.subr.mxu0 0.0
    %676 = vmatpush1.msra.mxu0 0.0
    %677 = vmatprep.subr.mxu0 0.0
    %678 = vmatpush1.msra.mxu0 0.0
    %679 = vmatprep.subr.mxu0 0.0
    %680 = vmatpush1.msra.mxu0 0.0
    %681 = vmatprep.subr.mxu0 0.0
    %682 = vmatpush1.msra.mxu0 0.0
    %683 = vmatprep.subr.mxu0 0.0
    %684 = vmatpush1.msra.mxu0 0.0
    %685 = vmatprep.subr.mxu0 0.0
    %686 = vmatpush1.msra.mxu0 0.0
    %687 = vmatprep.subr.mxu0 0.0
    %688 = vmatpush1.msra.mxu0 0.0
    %689 = vmatprep.subr.mxu0 0.0
    %690 = vmatpush1.msra.mxu0 0.0
    %691 = vmatprep.subr.mxu0 0.0
    %692 = vmatpush1.msra.mxu0 0.0
    %693 = vmatprep.subr.mxu0 0.0
    %694 = vmatpush1.msra.mxu0 0.0
    %695 = vmatprep.subr.mxu0 0.0
    %696 = vmatpush1.msra.mxu0 0.0
    %697 = vmatprep.mubr.f32.mxu0 0.0
    %698 = vmatmul.mubr.f32.gmra.mrb[0].mxu0 %v631
    %v699 = vpop.f32.mrb[0].mxu0
    %v700 = vadd.f32 0.0, %v699
    %v701 = vpop.f32.mrb[0].mxu0
    %v702 = vadd.f32 0.0, %v701
    %703 = vdwg.mxu0
    %704 = vmatprep.subr.mxu0 %v517
    %705 = vmatpush1.msra.mxu0 %v516
    %706 = vmatprep.subr.mxu0 %v533
    %707 = vmatpush1.msra.mxu0 %v532
    %708 = vmatprep.subr.mxu0 %v549
    %709 = vmatpush1.msra.mxu0 %v548
    %710 = vmatprep.subr.mxu0 %v565
    %711 = vmatpush1.msra.mxu0 %v564
    %712 = vmatprep.subr.mxu0 %v500
    %713 = vmatpush1.msra.mxu0 %v499
    %714 = vmatprep.subr.mxu0 %v581
    %715 = vmatpush1.msra.mxu0 %v580
    %716 = vmatprep.subr.mxu0 %v597
    %717 = vmatpush1.msra.mxu0 %v596
    %718 = vmatprep.subr.mxu0 %v613
    %719 = vmatpush1.msra.mxu0 %v612
    %720 = vmatprep.subr.mxu0 %v629
    %721 = vmatpush1.msra.mxu0 %v628
    %722 = vmatprep.subr.mxu0 0.0
    %723 = vmatpush1.msra.mxu0 0.0
    %724 = vmatprep.subr.mxu0 0.0
    %725 = vmatpush1.msra.mxu0 0.0
    %726 = vmatprep.subr.mxu0 0.0
    %727 = vmatpush1.msra.mxu0 0.0
    %728 = vmatprep.subr.mxu0 0.0
    %729 = vmatpush1.msra.mxu0 0.0
    %730 = vmatprep.subr.mxu0 0.0
    %731 = vmatpush1.msra.mxu0 0.0
    %732 = vmatprep.subr.mxu0 0.0
    %733 = vmatpush1.msra.mxu0 0.0
    %734 = vmatprep.subr.mxu0 0.0
    %735 = vmatpush1.msra.mxu0 0.0
    %736 = vmatprep.subr.mxu0 0.0
    %737 = vmatpush1.msra.mxu0 0.0
    %738 = vmatprep.subr.mxu0 0.0
    %739 = vmatpush1.msra.mxu0 0.0
    %740 = vmatprep.subr.mxu0 0.0
    %741 = vmatpush1.msra.mxu0 0.0
    %742 = vmatprep.subr.mxu0 0.0
    %743 = vmatpush1.msra.mxu0 0.0
    %744 = vmatprep.subr.mxu0 0.0
    %745 = vmatpush1.msra.mxu0 0.0
    %746 = vmatprep.subr.mxu0 0.0
    %747 = vmatpush1.msra.mxu0 0.0
    %748 = vmatprep.subr.mxu0 0.0
    %749 = vmatpush1.msra.mxu0 0.0
    %750 = vmatprep.subr.mxu0 0.0
    %751 = vmatpush1.msra.mxu0 0.0
    %752 = vmatprep.subr.mxu0 0.0
    %753 = vmatpush1.msra.mxu0 0.0
    %754 = vmatprep.subr.mxu0 0.0
    %755 = vmatpush1.msra.mxu0 0.0
    %756 = vmatprep.subr.mxu0 0.0
    %757 = vmatpush1.msra.mxu0 0.0
    %758 = vmatprep.subr.mxu0 0.0
    %759 = vmatpush1.msra.mxu0 0.0
    %760 = vmatprep.subr.mxu0 0.0
    %761 = vmatpush1.msra.mxu0 0.0
    %762 = vmatprep.subr.mxu0 0.0
    %763 = vmatpush1.msra.mxu0 0.0
    %764 = vmatprep.subr.mxu0 0.0
    %765 = vmatpush1.msra.mxu0 0.0
    %766 = vmatprep.subr.mxu0 0.0
    %767 = vmatpush1.msra.mxu0 0.0
    %768 = vmatprep.mubr.f32.mxu0 0.0
    %769 = vmatmul.mubr.f32.gmra.mrb[0].mxu0 %v631
    %v770 = vpop.f32.mrb[0].mxu0
    %v771 = vadd.f32 0.0, %v770
    %v772 = vpop.f32.mrb[0].mxu0
    %v773 = vadd.f32 0.0, %v772
    %774 = vdwg.mxu0
    %v775 = vadd.f32 %v700, %v702
    %v776 = vadd.f32 %v775, %v771
    %v777 = vadd.f32 %v776, %v773
    %778 = vadd.xlane.f32.xlu0 %v777
    %v779 = vpop.xlane.xlu0 %778
    %v780 = vmul.f32 %v700, %v700
    %v781 = vmul.f32 %v702, %v702
    %v782 = vmul.f32 %v771, %v771
    %v783 = vmul.f32 %v773, %v773
    %v784 = vadd.f32 %v780, %v781
    %v785 = vadd.f32 %v784, %v782
    %v786 = vadd.f32 %v785, %v783
    %787 = vadd.xlane.f32.xlu0 %v786
    %v788 = vpop.xlane.xlu0 %787
    %v789 = vmul.f32 %v779, 0.001953125
    %v790 = vmul.f32 %v788, 0.001953125
    %v791 = vmul.f32 %v789, %v789
    %v792 = vsub.f32 %v790, %v791
    %v793 = vmax.f32 %v792, 0.0
    %v794 = vadd.f32 %v793, 1e-05
    %v795 = vrsqrt.pop %v794
    %v796 = vmul.f32 %v167, %v795
    %v797 = vmul.f32 %v789, %v796
    %799 = vrot.lane.b32.xlu0 %v797, 1
    %v800 = vpop.permute.xlu0 %799
    %v802 = vsub.f32 %v167, %v800
    %804 = vset.pattern.permute.xlu0 2
    %805 = vperm.xlu0 %804, %v796
    %v806 = vpop.permute.xlu0 %805
    %v808 = vmul.f32 %v700, %v806
    %v809 = vmul.f32 %v702, %v806
    %v810 = vmul.f32 %v771, %v806
    %v811 = vmul.f32 %v773, %v806
    %813 = vset.pattern.permute.xlu0 3
    %814 = vperm.xlu0 %813, %v802
    %v815 = vpop.permute.xlu0 %814
    %v817 = vadd.f32 %v808, %v815
    %v818 = vadd.f32 %v809, %v815
    %v819 = vadd.f32 %v810, %v815
    %v820 = vadd.f32 %v811, %v815
    %v821 = vmax.f32 %v817, 0.0
    %v822 = vmax.f32 %v818, 0.0
    %v823 = vmax.f32 %v819, 0.0
    %v824 = vmax.f32 %v820, 0.0
    %v825 = vadd.f32 %v821, %v30
    %v826 = vadd.f32 %v822, %v31
    %v827 = vadd.f32 %v823, %v32
    %v828 = vadd.f32 %v824, %v33
    %829 = vst [vmem:[#allocation5] sm:$0xff] %v825
    %830 = vst [vmem:[#allocation5 + $0x8] sm:$0xff] %v826
    %831 = vst [vmem:[#allocation5 + $0x10] sm:$0xff] %v827
    %832 = vst [vmem:[#allocation5 + $0x18] sm:$0xff] %v828
    // Predicated region
    $region22: #{tpu_custom_call.1} parent=1 // pred_check
      _
    $region23: #{tpu_custom_call.1} parent=1 // pred_check_branch
      %834 = sbr.rel (0) target = $region25
    $region24: #{tpu_custom_call.1} parent=1 // pred_region
      %s836 = ssub.s32 512, 512
      %837 = vsyncadd [#allocation4], %s836
      %s839 = sshll.u32 [#allocation5], 4
      %s840 = int_to_ptr.vmem [resolvable:$true] %s839
      %842 = dma.vmem_to_hbm [thread:$0]  %s840, 512, %s4, [#allocation4]
    $region25: #{tpu_custom_call.1} parent=1 // pred_fallthru
      _
    // Predicated region
    $region26: #{tpu_custom_call.1} parent=1 // pred_check
      _
    $region27: #{tpu_custom_call.1} parent=1 // pred_check_branch
      %844 = sbr.rel (0) target = $region29
    $region28: #{tpu_custom_call.1} parent=1 // pred_region
      %845 = dma.done [#allocation4], 512
    $region29: #{tpu_custom_call.1} parent=1 // pred_fallthru
      _
    %846 = vsyncpa [#allocation3], 1
    %847 = vsyncpa [#allocation4], 1

</llo_original>
